<compile_context>
chip_gen: v7x
topology: tpu7x:2x2x1
jax: 0.10.0
libtpu: 0.0.40
codegen_flags: <defaults>
</compile_context>

<pallas_src>
import jax
import jax.numpy as jnp
from jax.experimental import pallas as pl
from jax.experimental.pallas import tpu as pltpu


# ----------------------------- Pallas kernel --------------------------------
def embeddings_kernel(p_ref, wc_ref, bc_ref, pool_ref, wh_ref, bh_ref,
                      o_ref, acc_ref):
    # p_ref    : (1, K, TL)    bf16  lane-dense im2col patch tile (TL lanes)
    # wc_ref   : (C_out, K)    bf16  conv weight in matmul form
    # bc_ref   : (C_out, 1)    f32   conv bias (broadcasts along lanes)
    # pool_ref : (TB, TL)      f32   block-diagonal 1/HW averaging tile
    # wh_ref   : (C_out, EP)   f32   head weight, zero-padded to EP lanes
    # bh_ref   : (1, EP)       f32   head bias, zero-padded to EP lanes
    # o_ref    : (1, TB, EP)   f32   L2-normalized embeddings (lane-dense)
    # acc_ref  : (TB, C_out)   f32   pooled-feature accumulator (VMEM scratch)
    l = pl.program_id(1)

    @pl.when(l == 0)
    def _():
        acc_ref[...] = jnp.zeros_like(acc_ref)

    p = p_ref[0]                                                     # (K, TL)

    # Conv as one MXU matmul over this lane tile: (C_out,K) @ (K,TL).
    conv = jnp.dot(wc_ref[...], p, preferred_element_type=jnp.float32)
    conv = jnp.maximum(conv + bc_ref[...], 0.0)                      # (C_out, TL)

    # Partial global-average-pool on the MXU: contract the lane axes of both
    # operands (A @ B.T form) -> (TB, C_out), accumulated across lane tiles.
    acc_ref[...] += jax.lax.dot_general(
        pool_ref[...], conv,
        dimension_numbers=(((1,), (1,)), ((), ())),
        preferred_element_type=jnp.float32)

    @pl.when(l == pl.num_programs(1) - 1)
    def _():
        # Head: linear projection + L2 normalization.  Padded lanes of wh/bh
        # are zero -> they add nothing to the norm and stay zero in the output.
        emb = jnp.dot(acc_ref[...], wh_ref[...],
                      preferred_element_type=jnp.float32)            # (TB, EP)
        emb = emb + bh_ref[...]
        inv_norm = jax.lax.rsqrt(
            jnp.sum(emb * emb, axis=-1, keepdims=True) + 1e-12)
        o_ref[0] = emb * inv_norm


# ------------------------------- Wrapper -------------------------------------
def _pick_tb(batch):
    """Batch-elements-per-grid-step. B<=2: one step (minimal overhead);
    otherwise keep >=2 parallel steps so v7x's two TensorCores both get work."""
    if batch <= 2:
        return batch
    tb = min(8, batch // 2)
    while batch % tb:
        tb -= 1
    return tb


def _pick_lane_tile(L, max_tile=2048):
    """Largest multiple-of-128 divisor of L that is <= max_tile lanes.  If L
    already fits (or has no such divisor), use the full extent (one tile)."""
    if L <= max_tile:
        return L
    start = (max_tile // 128) * 128
    for tl in range(start, 0, -128):
        if L % tl == 0:
            return tl
    return L


def embeddings_net(x_nchw, w_conv, b_conv, w_head, b_head,
                   tb=None, max_lane_tile=2048):
    """x_nchw: (B, C_in, H, W) float32.  Returns (B, E) L2-normalized embeddings."""
    B, C, H, W = x_nchw.shape
    KH = KW = 3
    C_out = w_conv.shape[0]
    E = w_head.shape[0]
    HW = H * W
    K = KH * KW * C
    EP = ((E + 127) // 128) * 128          # lane-dense output width
    if tb is None:
        tb = _pick_tb(B)
    assert B % tb == 0
    L = tb * HW                            # lane axis of the conv matmul
    TL = _pick_lane_tile(L, max_lane_tile)
    n_l = L // TL

    # ---- wrapper-side layout plumbing (not the hot path) --------------------
    # NCHW -> NHWC, pad=1, im2col (kh,kw major, C_in minor).
    x = jnp.transpose(x_nchw, (0, 2, 3, 1))                          # (B,H,W,C)
    xp = jnp.pad(x, ((0, 0), (1, 1), (1, 1), (0, 0)))
    patches = jnp.stack(
        [xp[:, dh:dh + H, dw:dw + W, :] for dh in range(KH) for dw in range(KW)],
        axis=-2,
    ).reshape(B, HW, K)                                              # (B,HW,K)

    # Group TB elements per grid step with (tb-major, spatial-minor) lanes:
    # (B, HW, K) -> (B//TB, K, TB*HW); bf16 for the dominant HBM stream.
    pg = (patches.reshape(B // tb, tb, HW, K)
                 .transpose(0, 3, 1, 2)
                 .reshape(B // tb, K, L)
                 .astype(jnp.bfloat16))

    # Conv weight (C_out, C_in, kh, kw) -> (C_out, kh*kw*C_in), matching the
    # (kh, kw, c_in) patch ordering.  bf16 operand, f32 MXU accumulation.
    wc = jnp.transpose(w_conv, (0, 2, 3, 1)).reshape(C_out, K).astype(jnp.bfloat16)
    bc = b_conv.reshape(C_out, 1).astype(jnp.float32)

    # Block-diagonal global-average-pool matrix: pool[t, l] = 1/HW iff l//HW == t.
    pool = (jnp.arange(L, dtype=jnp.int32) // HW ==
            jnp.arange(tb, dtype=jnp.int32)[:, None]).astype(jnp.float32) / HW

    # Head weight (E, C_out) -> (C_out, E), zero-padded to EP lanes; bias too.
    wh = jnp.pad(jnp.transpose(w_head, (1, 0)).astype(jnp.float32),
                 ((0, 0), (0, EP - E)))
    bh = jnp.pad(b_head.reshape(1, E).astype(jnp.float32), ((0, 0), (0, EP - E)))

    out = pl.pallas_call(
        embeddings_kernel,
        out_shape=jax.ShapeDtypeStruct((B // tb, tb, EP), jnp.float32),
        grid_spec=pltpu.PrefetchScalarGridSpec(
            num_scalar_prefetch=0,
            grid=(B // tb, n_l),
            in_specs=[
                pl.BlockSpec((1, K, TL), lambda b, l: (b, 0, l)),
                pl.BlockSpec((C_out, K), lambda b, l: (0, 0)),
                pl.BlockSpec((C_out, 1), lambda b, l: (0, 0)),
                pl.BlockSpec((tb, TL), lambda b, l: (0, l)),
                pl.BlockSpec((C_out, EP), lambda b, l: (0, 0)),
                pl.BlockSpec((1, EP), lambda b, l: (0, 0)),
            ],
            out_specs=pl.BlockSpec((1, tb, EP), lambda b, l: (b, 0, 0)),
            scratch_shapes=[pltpu.VMEM((tb, C_out), jnp.float32)],
        ),
        compiler_params=pltpu.CompilerParams(
            dimension_semantics=("parallel", "arbitrary")),
    )(pg, wc, bc, pool, wh, bh)

    return out.reshape(B, EP)[:, :E]


# --------------------------- Pure-JAX reference -------------------------------
def embeddings_net_ref(x_nchw, w_conv, b_conv, w_head, b_head):
    y = jax.lax.conv_general_dilated(
        x_nchw.astype(jnp.float32), w_conv.astype(jnp.float32),
        window_strides=(1, 1), padding=((1, 1), (1, 1)),
        dimension_numbers=("NCHW", "OIHW", "NCHW"))
    y = y + b_conv.reshape(1, -1, 1, 1)
    y = jnp.maximum(y, 0.0)
    feats = jnp.mean(y, axis=(2, 3))                                  # (B, C_out)
    emb = feats @ w_head.T + b_head
    return emb / jnp.sqrt(jnp.sum(emb * emb, axis=-1, keepdims=True) + 1e-12)


# --------------------------------- Main ---------------------------------------
def _run_case(key, B, C_in, H, W, C_out, E, max_lane_tile=2048):
    kx, kwc, kbc, kwh, kbh = jax.random.split(key, 5)
    x = jax.random.normal(kx, (B, C_in, H, W), dtype=jnp.float32)
    w_conv = 0.1 * jax.random.normal(kwc, (C_out, C_in, 3, 3), dtype=jnp.float32)
    b_conv = 0.05 * jax.random.normal(kbc, (C_out,), dtype=jnp.float32)
    w_head = 0.1 * jax.random.normal(kwh, (E, C_out), dtype=jnp.float32)
    b_head = 0.05 * jax.random.normal(kbh, (E,), dtype=jnp.float32)

    out = embeddings_net(x, w_conv, b_conv, w_head, b_head,
                         max_lane_tile=max_lane_tile)
    out = jax.block_until_ready(out)
    ref = embeddings_net_ref(x, w_conv, b_conv, w_head, b_head)
    assert out.shape == (B, E)
    # Kernel uses bf16 conv operands (f32 accumulation); reference is pure f32,
    # so compare at a bf16-appropriate tolerance.
    assert jnp.allclose(out, ref, atol=2e-2, rtol=2e-2), "mismatch vs reference"


if __name__ == "__main__":
    key = jax.random.PRNGKey(0)
    k1, k2 = jax.random.split(key, 2)

    # Primary (spec-consistent) shapes: single lane tile, single grid step.
    _run_case(k1, B=2, C_in=4, H=16, W=16, C_out=32, E=16)

    # Larger spatial/batch: exercises the multi-tile accumulator path
    # (grid = (2 parallel, 2 arbitrary) with the (TB, C_out) VMEM accumulator).
    _run_case(k2, B=4, C_in=4, H=32, W=32, C_out=32, E=16, max_lane_tile=1024)

    print("KERNEL_OK")
</pallas_src>

<mosaic_0001>
module attributes {stable_mosaic.version = 11 : i64} {
  func.func @embeddings_kernel(%arg0: i32, %arg1: i32, %arg2: memref<1x36x512xbf16, #tpu.memory_space<vmem>>, %arg3: memref<32x36xbf16, #tpu.memory_space<vmem>>, %arg4: memref<32x1xf32, #tpu.memory_space<vmem>>, %arg5: memref<2x512xf32, #tpu.memory_space<vmem>>, %arg6: memref<32x128xf32, #tpu.memory_space<vmem>>, %arg7: memref<1x128xf32, #tpu.memory_space<vmem>>, %arg8: memref<1x2x128xf32, #tpu.memory_space<vmem>>, %arg9: memref<2x32xf32, #tpu.memory_space<vmem>>) attributes {dimension_semantics = [#tpu.dimension_semantics<parallel>, #tpu.dimension_semantics<arbitrary>], iteration_bounds = array<i64: 1, 1>, scalar_prefetch = 0 : i64, scratch_operands = 1 : i64, tpu.core_type = #tpu.core_type<tc>, window_params = [{transform_indices = @transform_0, window_bounds = array<i64: 1, 36, 512>}, {pipeline_mode = #tpu.pipeline_mode<synchronous>, transform_indices = @transform_1, window_bounds = array<i64: 32, 36>}, {pipeline_mode = #tpu.pipeline_mode<synchronous>, transform_indices = @transform_2, window_bounds = array<i64: 32, 1>}, {transform_indices = @transform_3, window_bounds = array<i64: 2, 512>}, {pipeline_mode = #tpu.pipeline_mode<synchronous>, transform_indices = @transform_4, window_bounds = array<i64: 32, 128>}, {pipeline_mode = #tpu.pipeline_mode<synchronous>, transform_indices = @transform_5, window_bounds = array<i64: 1, 128>}, {transform_indices = @transform_6, window_bounds = array<i64: 1, 2, 128>}]} {
    %c0_i32 = arith.constant 0 : i32
    %0 = arith.cmpi eq, %arg1, %c0_i32 : i32
    %1 = arith.extui %0 : i1 to i32
    %c0_i32_0 = arith.constant 0 : i32
    %2 = arith.cmpi ne, %1, %c0_i32_0 : i32
    scf.if %2 {
      %cst_17 = arith.constant 0.000000e+00 : f32
      %20 = vector.broadcast %cst_17 : f32 to vector<2x32xf32>
      %c0_18 = arith.constant 0 : index
      %c0_19 = arith.constant 0 : index
      %21 = vector.load %arg9[%c0_18, %c0_19] : memref<2x32xf32, #tpu.memory_space<vmem>>, vector<2x32xf32>
      tpu.vector_store %arg9[%c0_18, %c0_19], %20 {strides = array<i32>} : memref<2x32xf32, #tpu.memory_space<vmem>>, vector<2x32xf32>,
    } else {
    }
    %c0 = arith.constant 0 : index
    %c0_1 = arith.constant 0 : index
    %c0_2 = arith.constant 0 : index
    %3 = vector.load %arg2[%c0, %c0_1, %c0_2] : memref<1x36x512xbf16, #tpu.memory_space<vmem>>, vector<1x36x512xbf16>
    %4 = vector.shape_cast %3 : vector<1x36x512xbf16> to vector<36x512xbf16>
    %c0_3 = arith.constant 0 : index
    %c0_4 = arith.constant 0 : index
    %5 = vector.load %arg3[%c0_3, %c0_4] : memref<32x36xbf16, #tpu.memory_space<vmem>>, vector<32x36xbf16>
    %cst = arith.constant dense<0.000000e+00> : vector<32x512xf32>
    %6 = tpu.matmul %5, %4, %cst {dimension_numbers = #tpu.dot_dimension_numbers<[1], [0], [0], [1], [0, 0, 1, 1], [], []>} : vector<32x36xbf16>, vector<36x512xbf16>, vector<32x512xf32> -> vector<32x512xf32>
    %c0_5 = arith.constant 0 : index
    %c0_6 = arith.constant 0 : index
    %7 = vector.load %arg4[%c0_5, %c0_6] : memref<32x1xf32, #tpu.memory_space<vmem>>, vector<32x1xf32>
    %8 = vector.broadcast %7 : vector<32x1xf32> to vector<32x512xf32>
    %9 = arith.addf %6, %8 : vector<32x512xf32>
    %cst_7 = arith.constant 0.000000e+00 : f32
    %10 = vector.broadcast %cst_7 : f32 to vector<32x512xf32>
    %11 = arith.maximumf %9, %10 : vector<32x512xf32>
    %c0_8 = arith.constant 0 : index
    %c0_9 = arith.constant 0 : index
    %12 = vector.load %arg9[%c0_8, %c0_9] : memref<2x32xf32, #tpu.memory_space<vmem>>, vector<2x32xf32>
    %c0_10 = arith.constant 0 : index
    %c0_11 = arith.constant 0 : index
    %13 = vector.load %arg5[%c0_10, %c0_11] : memref<2x512xf32, #tpu.memory_space<vmem>>, vector<2x512xf32>
    %cst_12 = arith.constant dense<0.000000e+00> : vector<2x32xf32>
    %14 = tpu.matmul %13, %11, %cst_12 {dimension_numbers = #tpu.dot_dimension_numbers<[1], [1], [0], [0], [0, 0, 1, 0], [], []>} : vector<2x512xf32>, vector<32x512xf32>, vector<2x32xf32> -> vector<2x32xf32>
    %15 = arith.addf %12, %14 : vector<2x32xf32>
    %c0_13 = arith.constant 0 : index
    %c0_14 = arith.constant 0 : index
    %16 = vector.load %arg9[%c0_13, %c0_14] : memref<2x32xf32, #tpu.memory_space<vmem>>, vector<2x32xf32>
    tpu.vector_store %arg9[%c0_13, %c0_14], %15 {strides = array<i32>} : memref<2x32xf32, #tpu.memory_space<vmem>>, vector<2x32xf32>,
    %c0_i32_15 = arith.constant 0 : i32
    %17 = arith.cmpi eq, %arg1, %c0_i32_15 : i32
    %18 = arith.extui %17 : i1 to i32
    %c0_i32_16 = arith.constant 0 : i32
    %19 = arith.cmpi ne, %18, %c0_i32_16 : i32
    scf.if %19 {
      %c0_17 = arith.constant 0 : index
      %c0_18 = arith.constant 0 : index
      %20 = vector.load %arg9[%c0_17, %c0_18] : memref<2x32xf32, #tpu.memory_space<vmem>>, vector<2x32xf32>
      %c0_19 = arith.constant 0 : index
      %c0_20 = arith.constant 0 : index
      %21 = vector.load %arg6[%c0_19, %c0_20] : memref<32x128xf32, #tpu.memory_space<vmem>>, vector<32x128xf32>
      %cst_21 = arith.constant dense<0.000000e+00> : vector<2x128xf32>
      %22 = tpu.matmul %20, %21, %cst_21 {dimension_numbers = #tpu.dot_dimension_numbers<[1], [0], [0], [1], [0, 0, 1, 1], [], []>} : vector<2x32xf32>, vector<32x128xf32>, vector<2x128xf32> -> vector<2x128xf32>
      %c0_22 = arith.constant 0 : index
      %c0_23 = arith.constant 0 : index
      %23 = vector.load %arg7[%c0_22, %c0_23] : memref<1x128xf32, #tpu.memory_space<vmem>>, vector<1x128xf32>
      %24 = vector.broadcast %23 : vector<1x128xf32> to vector<2x128xf32>
      %25 = arith.addf %22, %24 : vector<2x128xf32>
      %26 = arith.mulf %25, %25 : vector<2x128xf32>
      %cst_24 = arith.constant dense<0.000000e+00> : vector<2xf32>
      %27 = vector.multi_reduction <add>, %26, %cst_24 [1] : vector<2x128xf32> to vector<2xf32>
      %28 = vector.shape_cast %27 : vector<2xf32> to vector<2x1xf32>
      %cst_25 = arith.constant 9.99999996E-13 : f32
      %29 = vector.broadcast %cst_25 : f32 to vector<2x1xf32>
      %30 = arith.addf %28, %29 : vector<2x1xf32>
      %31 = math.rsqrt %30 : vector<2x1xf32>
      %32 = vector.broadcast %31 : vector<2x1xf32> to vector<2x128xf32>
      %33 = arith.mulf %25, %32 : vector<2x128xf32>
      %c0_26 = arith.constant 0 : index
      %c0_27 = arith.constant 0 : index
      %c0_28 = arith.constant 0 : index
      %34 = vector.load %arg8[%c0_26, %c0_27, %c0_28] : memref<1x2x128xf32, #tpu.memory_space<vmem>>, vector<1x2x128xf32>
      %35 = vector.shape_cast %34 : vector<1x2x128xf32> to vector<2x128xf32>
      %36 = vector.shape_cast %33 : vector<2x128xf32> to vector<1x2x128xf32>
      tpu.vector_store %arg8[%c0_26, %c0_27, %c0_28], %36 {strides = array<i32>} : memref<1x2x128xf32, #tpu.memory_space<vmem>>, vector<1x2x128xf32>,
    } else {
    }
    return
  }
  func.func @transform_0(%arg0: i32, %arg1: i32) -> (i32, i32, i32) {
    %c0_i32 = arith.constant 0 : i32
    %c0_i32_0 = arith.constant 0 : i32
    return %arg0, %c0_i32, %arg1 : i32, i32, i32
  }
  func.func @transform_1(%arg0: i32, %arg1: i32) -> (i32, i32) {
    %c0_i32 = arith.constant 0 : i32
    %c0_i32_0 = arith.constant 0 : i32
    %c0_i32_1 = arith.constant 0 : i32
    return %c0_i32, %c0_i32_0 : i32, i32
  }
  func.func @transform_2(%arg0: i32, %arg1: i32) -> (i32, i32) {
    %c0_i32 = arith.constant 0 : i32
    %c0_i32_0 = arith.constant 0 : i32
    %c0_i32_1 = arith.constant 0 : i32
    return %c0_i32, %c0_i32_0 : i32, i32
  }
  func.func @transform_3(%arg0: i32, %arg1: i32) -> (i32, i32) {
    %c0_i32 = arith.constant 0 : i32
    %c0_i32_0 = arith.constant 0 : i32
    return %c0_i32, %arg1 : i32, i32
  }
  func.func @transform_4(%arg0: i32, %arg1: i32) -> (i32, i32) {
    %c0_i32 = arith.constant 0 : i32
    %c0_i32_0 = arith.constant 0 : i32
    %c0_i32_1 = arith.constant 0 : i32
    return %c0_i32, %c0_i32_0 : i32, i32
  }
  func.func @transform_5(%arg0: i32, %arg1: i32) -> (i32, i32) {
    %c0_i32 = arith.constant 0 : i32
    %c0_i32_0 = arith.constant 0 : i32
    %c0_i32_1 = arith.constant 0 : i32
    return %c0_i32, %c0_i32_0 : i32, i32
  }
  func.func @transform_6(%arg0: i32, %arg1: i32) -> (i32, i32, i32) {
    %c0_i32 = arith.constant 0 : i32
    %c0_i32_0 = arith.constant 0 : i32
    %c0_i32_1 = arith.constant 0 : i32
    return %arg0, %c0_i32, %c0_i32_0 : i32, i32, i32
  }
}

</mosaic_0001>

<llo_original>
// kernel: tpu_custom_call.1
$region0: #{tpu_custom_call.1}
  #allocation0 [shape = 'u32[]', space=smem, size = 0x4, offset = 0x4, fixed_abs, tag = 'smem constant byte address 0x4 - core index']
  #allocation1 [shape = 'u32[144,128]{1,0:T(1,128)}', space=vmem, size = 0x12000, scoped, tag = 'internal scratch']
  #allocation2 [shape = 'f32[2,32]{1,0:T(2,128)}', space=vmem, size = 0x400, scoped, tag = 'scratch operand']
  %s0 = inlined_call_operand.hbm [shape: bf16[1,36,512], index: 0, kind: input, shape index: {}]
  %s1 = inlined_call_operand.vmem [shape: bf16[32,36], index: 1, kind: input, shape index: {}]
  %s2 = inlined_call_operand.vmem [shape: f32[32,1], index: 2, kind: input, shape index: {}]
  %s3 = inlined_call_operand.hbm [shape: f32[2,512], index: 3, kind: input, shape index: {}]
  %s4 = inlined_call_operand.vmem [shape: f32[32,128], index: 4, kind: input, shape index: {}]
  %s5 = inlined_call_operand.vmem [shape: f32[1,128], index: 5, kind: input, shape index: {}]
  %s6 = inlined_call_operand.hbm [shape: f32[1,2,128], index: 6, kind: output, shape index: {}]
  %s7 = sld [smem:[#allocation0]]
  $region50: #{tpu_custom_call.1} parent=0
    _
  %s9 = ssub.s32 1, %s7
  %s10 = scalar_select 0, %s9, %s7
  $region1: #{tpu_custom_call.1} parent=0
    #allocation3 [shape = 'u8[40960]{0}', space=vmem, size = 0xa000, scoped, tag = 'input window, operand 0, single buffered']
    #allocation4 [shape = 's32[1]{0}', space=sflag, size = 0x4, scoped, tag = 'scoped memory for tpu_custom_call.1']
    #allocation5 [shape = 's32[1]{0}', space=sflag, size = 0x4, scoped, tag = 'scoped memory for tpu_custom_call.1']
    #allocation6 [shape = 'u8[4096]{0}', space=vmem, size = 0x1000, scoped, tag = 'input window, operand 3, single buffered']
    #allocation7 [shape = 's32[1]{0}', space=sflag, size = 0x4, scoped, tag = 'scoped memory for tpu_custom_call.1']
    #allocation8 [shape = 'u8[1024]{0}', space=vmem, size = 0x400, scoped, tag = 'output window, operand 0, single buffered']
    %11 = vsyncpa [#allocation4], 0
    %12 = vsyncpa [#allocation7], 0
    %13 = vsyncpa [#allocation5], 0
    // Predicated region
    $region2: #{tpu_custom_call.1} parent=1 // pred_check
      _
    $region3: #{tpu_custom_call.1} parent=1 // pred_check_branch
      %15 = sbr.rel (0) target = $region5
    $region4: #{tpu_custom_call.1} parent=1 // pred_region
      %s17 = ssub.s32 1280, 1280
      %18 = vsyncadd [#allocation4], %s17
      %s19 = sshll.u32 [#allocation3], 4
      %s20 = int_to_ptr.vmem [resolvable:$true] %s19
      %25 = dma.hbm_to_vmem [thread:$0]  %s0, 1280, %s20, [#allocation4], 256, 256, 16
    $region5: #{tpu_custom_call.1} parent=1 // pred_fallthru
      _
    // Predicated region
    $region6: #{tpu_custom_call.1} parent=1 // pred_check
      _
    $region7: #{tpu_custom_call.1} parent=1 // pred_check_branch
      %27 = sbr.rel (0) target = $region9
    $region8: #{tpu_custom_call.1} parent=1 // pred_region
      _
    $region9: #{tpu_custom_call.1} parent=1 // pred_fallthru
      _
    // Predicated region
    $region10: #{tpu_custom_call.1} parent=1 // pred_check
      _
    $region11: #{tpu_custom_call.1} parent=1 // pred_check_branch
      %29 = sbr.rel (0) target = $region13
    $region12: #{tpu_custom_call.1} parent=1 // pred_region
      _
    $region13: #{tpu_custom_call.1} parent=1 // pred_fallthru
      _
    // Predicated region
    $region14: #{tpu_custom_call.1} parent=1 // pred_check
      _
    $region15: #{tpu_custom_call.1} parent=1 // pred_check_branch
      %31 = sbr.rel (0) target = $region17
    $region16: #{tpu_custom_call.1} parent=1 // pred_region
      %s33 = ssub.s32 128, 128
      %34 = vsyncadd [#allocation7], %s33
      %s36 = sshll.u32 [#allocation6], 4
      %s37 = int_to_ptr.vmem [resolvable:$true] %s36
      %39 = dma.hbm_to_vmem [thread:$0]  %s3, 128, %s37, [#allocation7]
    $region17: #{tpu_custom_call.1} parent=1 // pred_fallthru
      _
    // Predicated region
    $region18: #{tpu_custom_call.1} parent=1 // pred_check
      _
    $region19: #{tpu_custom_call.1} parent=1 // pred_check_branch
      %41 = sbr.rel (0) target = $region21
    $region20: #{tpu_custom_call.1} parent=1 // pred_region
      _
    $region21: #{tpu_custom_call.1} parent=1 // pred_fallthru
      _
    // Predicated region
    $region22: #{tpu_custom_call.1} parent=1 // pred_check
      _
    $region23: #{tpu_custom_call.1} parent=1 // pred_check_branch
      %43 = sbr.rel (0) target = $region25
    $region24: #{tpu_custom_call.1} parent=1 // pred_region
      _
    $region25: #{tpu_custom_call.1} parent=1 // pred_fallthru
      _
    // Predicated region
    $region26: #{tpu_custom_call.1} parent=1 // pred_check
      _
    $region27: #{tpu_custom_call.1} parent=1 // pred_check_branch
      %45 = sbr.rel (0) target = $region29
    $region28: #{tpu_custom_call.1} parent=1 // pred_region
      %46 = dma.done [#allocation4], 1280
    $region29: #{tpu_custom_call.1} parent=1 // pred_fallthru
      _
    // Predicated region
    $region30: #{tpu_custom_call.1} parent=1 // pred_check
      _
    $region31: #{tpu_custom_call.1} parent=1 // pred_check_branch
      %48 = sbr.rel (0) target = $region33
    $region32: #{tpu_custom_call.1} parent=1 // pred_region
      %49 = dma.done [#allocation7], 128
    $region33: #{tpu_custom_call.1} parent=1 // pred_fallthru
      _
    %p51 = scmp.eq.s32.totalorder 0, 0
    // Predicated region
    $region34: #{tpu_custom_call.1} parent=1 // pred_check
      %p52 = pneg %p51
    $region35: #{tpu_custom_call.1} parent=1 // pred_check_branch
      %54 = sbr.rel (%p52) target = $region37
    $region36: #{tpu_custom_call.1} parent=1 // pred_region
      %vm55 = vcmask 254976
      %56 = vst.msk [vmem:[#allocation2] sm:$0x3] %vm55, 0.0
    $region37: #{tpu_custom_call.1} parent=1 // pred_fallthru
      _
    %v57 = vld [vmem:[#allocation3] sm:$0xff]
    %v58 = vld [vmem:[#allocation3 + $0x8] sm:$0xff]
    %v59 = vld [vmem:[#allocation3 + $0x10] sm:$0xff]
    %v60 = vld [vmem:[#allocation3 + $0x18] sm:$0xff]
    %v61 = vld [vmem:[#allocation3 + $0x20] sm:$0xff]
    %v62 = vld [vmem:[#allocation3 + $0x28] sm:$0xff]
    %v63 = vld [vmem:[#allocation3 + $0x30] sm:$0xff]
    %v64 = vld [vmem:[#allocation3 + $0x38] sm:$0xff]
    %v65 = vld [vmem:[#allocation3 + $0x40] sm:$0x33]
    %v66 = vld [vmem:[#allocation3 + $0x48] sm:$0x33]
    %v67 = vld [vmem:[%s1] sm:$0xf]
    %v68 = vld [vmem:[%s1 + $0x4] sm:$0xf]
    %v69 = vld [vmem:[%s1 + $0x8] sm:$0xf]
    %v70 = vld [vmem:[%s1 + $0xc] sm:$0xf]
    %v71 = vld [vmem:[%s2] sm:$0xff]
    %v72 = vld [vmem:[%s2 + $0x8] sm:$0xff]
    %v73 = vld [vmem:[%s2 + $0x10] sm:$0xff]
    %v74 = vld [vmem:[%s2 + $0x18] sm:$0xff]
    %76 = vset.pattern.permute.xlu0 0
    %77 = vperm.xlu0 %76, %v71
    %v78 = vpop.permute.xlu0 %77
    %81 = vset.pattern.permute.xlu0 0
    %82 = vperm.xlu0 %81, %v72
    %v83 = vpop.permute.xlu0 %82
    %86 = vset.pattern.permute.xlu0 0
    %87 = vperm.xlu0 %86, %v73
    %v88 = vpop.permute.xlu0 %87
    %91 = vset.pattern.permute.xlu0 0
    %92 = vperm.xlu0 %91, %v74
    %v93 = vpop.permute.xlu0 %92
    %v99 = vunpack.c.l.b16 %v67
    %v100 = vunpack.c.l.b16 %v68
    %v101 = vunpack.c.l.b16 %v69
    %v102 = vunpack.c.l.b16 %v70
    %v103 = vpack.c.b16 %v100, %v99
    %v104 = vpack.c.b16 %v102, %v101
    %v115 = vunpack.c.l.b16 %v57
    %v116 = vunpack.c.h.b16 %v57
    %v117 = vunpack.c.l.b16 %v58
    %v118 = vunpack.c.h.b16 %v58
    %v119 = vunpack.c.l.b16 %v59
    %v120 = vunpack.c.h.b16 %v59
    %v121 = vunpack.c.l.b16 %v60
    %v122 = vunpack.c.h.b16 %v60
    %v123 = vunpack.c.l.b16 %v61
    %v124 = vunpack.c.h.b16 %v61
    %v125 = vunpack.c.l.b16 %v62
    %v126 = vunpack.c.h.b16 %v62
    %v127 = vunpack.c.l.b16 %v63
    %v128 = vunpack.c.h.b16 %v63
    %v129 = vunpack.c.l.b16 %v64
    %v130 = vunpack.c.h.b16 %v64
    %v131 = vunpack.c.l.b16 %v65
    %v132 = vunpack.c.h.b16 %v65
    %v133 = vunpack.c.l.b16 %v66
    %v134 = vunpack.c.h.b16 %v66
    %v135 = vpack.c.b16 %v119, %v115
    %v136 = vpack.c.b16 %v120, %v116
    %v137 = vpack.c.b16 %v121, %v117
    %v138 = vpack.c.b16 %v122, %v118
    %v139 = vpack.c.b16 %v127, %v123
    %v140 = vpack.c.b16 %v128, %v124
    %v141 = vpack.c.b16 %v129, %v125
    %v142 = vpack.c.b16 %v130, %v126
    %v143 = vpack.c.b16 %v131, %v131
    %v144 = vpack.c.b16 %v132, %v132
    %v145 = vpack.c.b16 %v133, %v133
    %v146 = vpack.c.b16 %v134, %v134
    %vm155 = vcmask 293888
    %v157 = vsel %vm155, %v103, 0
    %v160 = vsel %vm155, %v104, 0
    %vm162 = vcmask 1041408
    %v164 = vsel %vm162, %v143, 0
    %v167 = vsel %vm162, %v144, 0
    %v170 = vsel %vm162, %v145, 0
    %v173 = vsel %vm162, %v146, 0
    %175 = vmatprep.subr.bf16.mxu0 %v136
    %176 = vmatpush1.bf16.msra.mxu0 %v135
    %177 = vmatprep.subr.bf16.mxu0 %v140
    %178 = vmatpush1.bf16.msra.mxu0 %v139
    %179 = vmatprep.subr.bf16.mxu0 %v167
    %180 = vmatpush1.bf16.msra.mxu0 %v164
    %181 = vmatprep.subr.bf16.mxu0 0
    %182 = vmatpush1.bf16.msra.mxu0 0
    %183 = vmatprep.subr.bf16.mxu0 0
    %184 = vmatpush1.bf16.msra.mxu0 0
    %185 = vmatprep.subr.bf16.mxu0 0
    %186 = vmatpush1.bf16.msra.mxu0 0
    %187 = vmatprep.subr.bf16.mxu0 0
    %188 = vmatpush1.bf16.msra.mxu0 0
    %189 = vmatprep.subr.bf16.mxu0 0
    %190 = vmatpush1.bf16.msra.mxu0 0
    %191 = vmatprep.subr.bf16.mxu0 0
    %192 = vmatpush1.bf16.msra.mxu0 0
    %193 = vmatprep.subr.bf16.mxu0 0
    %194 = vmatpush1.bf16.msra.mxu0 0
    %195 = vmatprep.subr.bf16.mxu0 0
    %196 = vmatpush1.bf16.msra.mxu0 0
    %197 = vmatprep.subr.bf16.mxu0 0
    %198 = vmatpush1.bf16.msra.mxu0 0
    %199 = vmatprep.subr.bf16.mxu0 0
    %200 = vmatpush1.bf16.msra.mxu0 0
    %201 = vmatprep.subr.bf16.mxu0 0
    %202 = vmatpush1.bf16.msra.mxu0 0
    %203 = vmatprep.subr.bf16.mxu0 0
    %204 = vmatpush1.bf16.msra.mxu0 0
    %205 = vmatprep.subr.bf16.mxu0 0
    %206 = vmatpush1.bf16.msra.mxu0 0
    %207 = vmatprep.mubr.bf16.mxu0 0
    %208 = vmatmul.mubr.bf16.gmra.mrb[0].mxu0 %v157
    %v209 = vpop.f32.mrb[0].mxu0
    %v210 = vadd.f32 %v78, %v209
    %v211 = vpop.f32.mrb[0].mxu0
    %v212 = vadd.f32 %v78, %v211
    %v213 = vpop.f32.mrb[0].mxu0
    %v214 = vadd.f32 %v83, %v213
    %v215 = vpop.f32.mrb[0].mxu0
    %v216 = vadd.f32 %v83, %v215
    %217 = vmatprep.mubr.bf16.mxu0 0
    %218 = vmatmul.mubr.bf16.gmra.mrb[0].mxu0 %v160
    %v219 = vpop.f32.mrb[0].mxu0
    %v220 = vadd.f32 %v88, %v219
    %v221 = vpop.f32.mrb[0].mxu0
    %v222 = vadd.f32 %v88, %v221
    %v223 = vpop.f32.mrb[0].mxu0
    %v224 = vadd.f32 %v93, %v223
    %v225 = vpop.f32.mrb[0].mxu0
    %v226 = vadd.f32 %v93, %v225
    %227 = vdwg.mxu0
    %228 = vmatprep.subr.bf16.mxu0 %v138
    %229 = vmatpush1.bf16.msra.mxu0 %v137
    %230 = vmatprep.subr.bf16.mxu0 %v142
    %231 = vmatpush1.bf16.msra.mxu0 %v141
    %232 = vmatprep.subr.bf16.mxu0 %v173
    %233 = vmatpush1.bf16.msra.mxu0 %v170
    %234 = vmatprep.subr.bf16.mxu0 0
    %235 = vmatpush1.bf16.msra.mxu0 0
    %236 = vmatprep.subr.bf16.mxu0 0
    %237 = vmatpush1.bf16.msra.mxu0 0
    %238 = vmatprep.subr.bf16.mxu0 0
    %239 = vmatpush1.bf16.msra.mxu0 0
    %240 = vmatprep.subr.bf16.mxu0 0
    %241 = vmatpush1.bf16.msra.mxu0 0
    %242 = vmatprep.subr.bf16.mxu0 0
    %243 = vmatpush1.bf16.msra.mxu0 0
    %244 = vmatprep.subr.bf16.mxu0 0
    %245 = vmatpush1.bf16.msra.mxu0 0
    %246 = vmatprep.subr.bf16.mxu0 0
    %247 = vmatpush1.bf16.msra.mxu0 0
    %248 = vmatprep.subr.bf16.mxu0 0
    %249 = vmatpush1.bf16.msra.mxu0 0
    %250 = vmatprep.subr.bf16.mxu0 0
    %251 = vmatpush1.bf16.msra.mxu0 0
    %252 = vmatprep.subr.bf16.mxu0 0
    %253 = vmatpush1.bf16.msra.mxu0 0
    %254 = vmatprep.subr.bf16.mxu0 0
    %255 = vmatpush1.bf16.msra.mxu0 0
    %256 = vmatprep.subr.bf16.mxu0 0
    %257 = vmatpush1.bf16.msra.mxu0 0
    %258 = vmatprep.subr.bf16.mxu0 0
    %259 = vmatpush1.bf16.msra.mxu0 0
    %260 = vmatprep.mubr.bf16.mxu0 0
    %261 = vmatmul.mubr.bf16.gmra.mrb[0].mxu0 %v157
    %v262 = vpop.f32.mrb[0].mxu0
    %v263 = vadd.f32 %v78, %v262
    %v264 = vpop.f32.mrb[0].mxu0
    %v265 = vadd.f32 %v78, %v264
    %v266 = vpop.f32.mrb[0].mxu0
    %v267 = vadd.f32 %v83, %v266
    %v268 = vpop.f32.mrb[0].mxu0
    %v269 = vadd.f32 %v83, %v268
    %270 = vmatprep.mubr.bf16.mxu0 0
    %271 = vmatmul.mubr.bf16.gmra.mrb[0].mxu0 %v160
    %v272 = vpop.f32.mrb[0].mxu0
    %v273 = vadd.f32 %v88, %v272
    %v274 = vpop.f32.mrb[0].mxu0
    %v275 = vadd.f32 %v88, %v274
    %v276 = vpop.f32.mrb[0].mxu0
    %v277 = vadd.f32 %v93, %v276
    %v278 = vpop.f32.mrb[0].mxu0
    %v279 = vadd.f32 %v93, %v278
    %280 = vdwg.mxu0
    %v281 = vmax.f32 %v210, 0.0
    %v282 = vmax.f32 %v212, 0.0
    %v283 = vmax.f32 %v263, 0.0
    %v284 = vmax.f32 %v265, 0.0
    %v285 = vmax.f32 %v214, 0.0
    %v286 = vmax.f32 %v216, 0.0
    %v287 = vmax.f32 %v267, 0.0
    %v288 = vmax.f32 %v269, 0.0
    %v289 = vmax.f32 %v220, 0.0
    %v290 = vmax.f32 %v222, 0.0
    %v291 = vmax.f32 %v273, 0.0
    %v292 = vmax.f32 %v275, 0.0
    %v293 = vmax.f32 %v224, 0.0
    %v294 = vmax.f32 %v226, 0.0
    %v295 = vmax.f32 %v277, 0.0
    %v296 = vmax.f32 %v279, 0.0
    %v297 = vld [vmem:[#allocation2] sm:$0x3]
    %v298 = vld [vmem:[#allocation6] sm:$0xff]
    %v300 = vcombine.high %v298, %v298
    %v302 = vunpack.c.l.s4 1983009808
    %v303 = vunpack.c.0.s8 %v302
    %v304 = vlaneseq
    %v305 = vshrl.u32 %v304, 7
    %v306 = vsub.s32 %v303, %v305
    %v307 = vrot.slane %v298, %v306
    %v309 = vunpack.c.l.s4 1983009808
    %v310 = vunpack.c.0.s8 %v309
    %v311 = vlaneseq
    %v312 = vshrl.u32 %v311, 7
    %v313 = vsub.s32 %v310, %v312
    %v314 = vrot.slane %v300, %v313
    %v315 = vcombine.high %v307, %v307
    %v316 = vcombine.high %v314, %v314
    %321 = vmatprep.subr.mxu0 %v282
    %322 = vmatpush1.xpose.msra.mxu0 %v281
    %323 = vmatprep.subr.mxu0 %v286
    %324 = vmatpush1.xpose.msra.mxu0 %v285
    %325 = vmatprep.subr.mxu0 %v290
    %326 = vmatpush1.xpose.msra.mxu0 %v289
    %327 = vmatprep.subr.mxu0 %v294
    %328 = vmatpush1.xpose.msra.mxu0 %v293
    %329 = vmatprep.subr.mxu0 0.0
    %330 = vmatpush1.xpose.msra.mxu0 0.0
    %331 = vmatprep.subr.mxu0 0.0
    %332 = vmatpush1.xpose.msra.mxu0 0.0
    %333 = vmatprep.subr.mxu0 0.0
    %334 = vmatpush1.xpose.msra.mxu0 0.0
    %335 = vmatprep.subr.mxu0 0.0
    %336 = vmatpush1.xpose.msra.mxu0 0.0
    %337 = vmatprep.subr.mxu0 0.0
    %338 = vmatpush1.xpose.msra.mxu0 0.0
    %339 = vmatprep.subr.mxu0 0.0
    %340 = vmatpush1.xpose.msra.mxu0 0.0
    %341 = vmatprep.subr.mxu0 0.0
    %342 = vmatpush1.xpose.msra.mxu0 0.0
    %343 = vmatprep.subr.mxu0 0.0
    %344 = vmatpush1.xpose.msra.mxu0 0.0
    %345 = vmatprep.subr.mxu0 0.0
    %346 = vmatpush1.xpose.msra.mxu0 0.0
    %347 = vmatprep.subr.mxu0 0.0
    %348 = vmatpush1.xpose.msra.mxu0 0.0
    %349 = vmatprep.subr.mxu0 0.0
    %350 = vmatpush1.xpose.msra.mxu0 0.0
    %351 = vmatprep.subr.mxu0 0.0
    %352 = vmatpush1.xpose.msra.mxu0 0.0
    %353 = vmatprep.subr.mxu0 0.0
    %354 = vmatpush1.xpose.msra.mxu0 0.0
    %355 = vmatprep.subr.mxu0 0.0
    %356 = vmatpush1.xpose.msra.mxu0 0.0
    %357 = vmatprep.subr.mxu0 0.0
    %358 = vmatpush1.xpose.msra.mxu0 0.0
    %359 = vmatprep.subr.mxu0 0.0
    %360 = vmatpush1.xpose.msra.mxu0 0.0
    %361 = vmatprep.subr.mxu0 0.0
    %362 = vmatpush1.xpose.msra.mxu0 0.0
    %363 = vmatprep.subr.mxu0 0.0
    %364 = vmatpush1.xpose.msra.mxu0 0.0
    %365 = vmatprep.subr.mxu0 0.0
    %366 = vmatpush1.xpose.msra.mxu0 0.0
    %367 = vmatprep.subr.mxu0 0.0
    %368 = vmatpush1.xpose.msra.mxu0 0.0
    %369 = vmatprep.subr.mxu0 0.0
    %370 = vmatpush1.xpose.msra.mxu0 0.0
    %371 = vmatprep.subr.mxu0 0.0
    %372 = vmatpush1.xpose.msra.mxu0 0.0
    %373 = vmatprep.subr.mxu0 0.0
    %374 = vmatpush1.xpose.msra.mxu0 0.0
    %375 = vmatprep.subr.mxu0 0.0
    %376 = vmatpush1.xpose.msra.mxu0 0.0
    %377 = vmatprep.subr.mxu0 0.0
    %378 = vmatpush1.xpose.msra.mxu0 0.0
    %379 = vmatprep.subr.mxu0 0.0
    %380 = vmatpush1.xpose.msra.mxu0 0.0
    %381 = vmatprep.subr.mxu0 0.0
    %382 = vmatpush1.xpose.msra.mxu0 0.0
    %383 = vmatprep.subr.mxu0 0.0
    %384 = vmatpush1.xpose.msra.mxu0 0.0
    %385 = vmatprep.mubr.f32.mxu0 %v315
    %386 = vmatmul.mubr.f32.gmra.mrb[0].mxu0 %v307
    %v387 = vpop.f32.mrb[0].mxu0
    %v388 = vadd.f32 0.0, %v387
    %v389 = vpop.f32.mrb[0].mxu0
    %390 = vdwg.mxu0
    %391 = vmatprep.subr.mxu0 %v284
    %392 = vmatpush1.xpose.msra.mxu0 %v283
    %393 = vmatprep.subr.mxu0 %v288
    %394 = vmatpush1.xpose.msra.mxu0 %v287
    %395 = vmatprep.subr.mxu0 %v292
    %396 = vmatpush1.xpose.msra.mxu0 %v291
    %397 = vmatprep.subr.mxu0 %v296
    %398 = vmatpush1.xpose.msra.mxu0 %v295
    %399 = vmatprep.subr.mxu0 0.0
    %400 = vmatpush1.xpose.msra.mxu0 0.0
    %401 = vmatprep.subr.mxu0 0.0
    %402 = vmatpush1.xpose.msra.mxu0 0.0
    %403 = vmatprep.subr.mxu0 0.0
    %404 = vmatpush1.xpose.msra.mxu0 0.0
    %405 = vmatprep.subr.mxu0 0.0
    %406 = vmatpush1.xpose.msra.mxu0 0.0
    %407 = vmatprep.subr.mxu0 0.0
    %408 = vmatpush1.xpose.msra.mxu0 0.0
    %409 = vmatprep.subr.mxu0 0.0
    %410 = vmatpush1.xpose.msra.mxu0 0.0
    %411 = vmatprep.subr.mxu0 0.0
    %412 = vmatpush1.xpose.msra.mxu0 0.0
    %413 = vmatprep.subr.mxu0 0.0
    %414 = vmatpush1.xpose.msra.mxu0 0.0
    %415 = vmatprep.subr.mxu0 0.0
    %416 = vmatpush1.xpose.msra.mxu0 0.0
    %417 = vmatprep.subr.mxu0 0.0
    %418 = vmatpush1.xpose.msra.mxu0 0.0
    %419 = vmatprep.subr.mxu0 0.0
    %420 = vmatpush1.xpose.msra.mxu0 0.0
    %421 = vmatprep.subr.mxu0 0.0
    %422 = vmatpush1.xpose.msra.mxu0 0.0
    %423 = vmatprep.subr.mxu0 0.0
    %424 = vmatpush1.xpose.msra.mxu0 0.0
    %425 = vmatprep.subr.mxu0 0.0
    %426 = vmatpush1.xpose.msra.mxu0 0.0
    %427 = vmatprep.subr.mxu0 0.0
    %428 = vmatpush1.xpose.msra.mxu0 0.0
    %429 = vmatprep.subr.mxu0 0.0
    %430 = vmatpush1.xpose.msra.mxu0 0.0
    %431 = vmatprep.subr.mxu0 0.0
    %432 = vmatpush1.xpose.msra.mxu0 0.0
    %433 = vmatprep.subr.mxu0 0.0
    %434 = vmatpush1.xpose.msra.mxu0 0.0
    %435 = vmatprep.subr.mxu0 0.0
    %436 = vmatpush1.xpose.msra.mxu0 0.0
    %437 = vmatprep.subr.mxu0 0.0
    %438 = vmatpush1.xpose.msra.mxu0 0.0
    %439 = vmatprep.subr.mxu0 0.0
    %440 = vmatpush1.xpose.msra.mxu0 0.0
    %441 = vmatprep.subr.mxu0 0.0
    %442 = vmatpush1.xpose.msra.mxu0 0.0
    %443 = vmatprep.subr.mxu0 0.0
    %444 = vmatpush1.xpose.msra.mxu0 0.0
    %445 = vmatprep.subr.mxu0 0.0
    %446 = vmatpush1.xpose.msra.mxu0 0.0
    %447 = vmatprep.subr.mxu0 0.0
    %448 = vmatpush1.xpose.msra.mxu0 0.0
    %449 = vmatprep.subr.mxu0 0.0
    %450 = vmatpush1.xpose.msra.mxu0 0.0
    %451 = vmatprep.subr.mxu0 0.0
    %452 = vmatpush1.xpose.msra.mxu0 0.0
    %453 = vmatprep.subr.mxu0 0.0
    %454 = vmatpush1.xpose.msra.mxu0 0.0
    %455 = vmatprep.mubr.f32.mxu0 %v316
    %456 = vmatmul.mubr.f32.gmra.mrb[0].mxu0 %v314
    %v457 = vpop.f32.mrb[0].mxu0
    %v458 = vadd.f32 %v388, %v457
    %v459 = vpop.f32.mrb[0].mxu0
    %460 = vdwg.mxu0
    %v461 = vadd.f32 %v297, %v458
    %vm462 = vcmask 254976
    %463 = vst.msk [vmem:[#allocation2] sm:$0x3] %vm462, %v461
    // Predicated region
    $region38: #{tpu_custom_call.1} parent=1 // pred_check
      %p464 = pneg %p51
    $region39: #{tpu_custom_call.1} parent=1 // pred_check_branch
      %466 = sbr.rel (%p464) target = $region41
    $region40: #{tpu_custom_call.1} parent=1 // pred_region
      %v467 = vld [vmem:[#allocation2] sm:$0x3]
      %v468 = vld [vmem:[%s4] sm:$0xff]
      %v469 = vld [vmem:[%s4 + $0x8] sm:$0xff]
      %v470 = vld [vmem:[%s4 + $0x10] sm:$0xff]
      %v471 = vld [vmem:[%s4 + $0x18] sm:$0xff]
      %v472 = vld [vmem:[%s5] sm:$0x1]
      %v474 = vlaneseq
      %v475 = vshrl.u32 %v474, 7
      %v476 = vsub.s32 0, %v475
      %v477 = vrot.slane %v472, %v476
      %vm479 = vcmask 261120
      %v481 = vsel %vm479, %v467, 0
      %483 = vmatprep.subr.mxu0 0.0
      %484 = vmatpush1.msra.mxu0 %v468
      %485 = vmatprep.subr.mxu0 0.0
      %486 = vmatpush1.msra.mxu0 %v469
      %487 = vmatprep.subr.mxu0 0.0
      %488 = vmatpush1.msra.mxu0 %v470
      %489 = vmatprep.subr.mxu0 0.0
      %490 = vmatpush1.msra.mxu0 %v471
      %491 = vmatprep.subr.mxu0 0.0
      %492 = vmatpush1.msra.mxu0 0.0
      %493 = vmatprep.subr.mxu0 0.0
      %494 = vmatpush1.msra.mxu0 0.0
      %495 = vmatprep.subr.mxu0 0.0
      %496 = vmatpush1.msra.mxu0 0.0
      %497 = vmatprep.subr.mxu0 0.0
      %498 = vmatpush1.msra.mxu0 0.0
      %499 = vmatprep.subr.mxu0 0.0
      %500 = vmatpush1.msra.mxu0 0.0
      %501 = vmatprep.subr.mxu0 0.0
      %502 = vmatpush1.msra.mxu0 0.0
      %503 = vmatprep.subr.mxu0 0.0
      %504 = vmatpush1.msra.mxu0 0.0
      %505 = vmatprep.subr.mxu0 0.0
      %506 = vmatpush1.msra.mxu0 0.0
      %507 = vmatprep.subr.mxu0 0.0
      %508 = vmatpush1.msra.mxu0 0.0
      %509 = vmatprep.subr.mxu0 0.0
      %510 = vmatpush1.msra.mxu0 0.0
      %511 = vmatprep.subr.mxu0 0.0
      %512 = vmatpush1.msra.mxu0 0.0
      %513 = vmatprep.subr.mxu0 0.0
      %514 = vmatpush1.msra.mxu0 0.0
      %515 = vmatprep.subr.mxu0 0.0
      %516 = vmatpush1.msra.mxu0 0.0
      %517 = vmatprep.subr.mxu0 0.0
      %518 = vmatpush1.msra.mxu0 0.0
      %519 = vmatprep.subr.mxu0 0.0
      %520 = vmatpush1.msra.mxu0 0.0
      %521 = vmatprep.subr.mxu0 0.0
      %522 = vmatpush1.msra.mxu0 0.0
      %523 = vmatprep.subr.mxu0 0.0
      %524 = vmatpush1.msra.mxu0 0.0
      %525 = vmatprep.subr.mxu0 0.0
      %526 = vmatpush1.msra.mxu0 0.0
      %527 = vmatprep.subr.mxu0 0.0
      %528 = vmatpush1.msra.mxu0 0.0
      %529 = vmatprep.subr.mxu0 0.0
      %530 = vmatpush1.msra.mxu0 0.0
      %531 = vmatprep.subr.mxu0 0.0
      %532 = vmatpush1.msra.mxu0 0.0
      %533 = vmatprep.subr.mxu0 0.0
      %534 = vmatpush1.msra.mxu0 0.0
      %535 = vmatprep.subr.mxu0 0.0
      %536 = vmatpush1.msra.mxu0 0.0
      %537 = vmatprep.subr.mxu0 0.0
      %538 = vmatpush1.msra.mxu0 0.0
      %539 = vmatprep.subr.mxu0 0.0
      %540 = vmatpush1.msra.mxu0 0.0
      %541 = vmatprep.subr.mxu0 0.0
      %542 = vmatpush1.msra.mxu0 0.0
      %543 = vmatprep.subr.mxu0 0.0
      %544 = vmatpush1.msra.mxu0 0.0
      %545 = vmatprep.subr.mxu0 0.0
      %546 = vmatpush1.msra.mxu0 0.0
      %547 = vmatprep.mubr.f32.mxu0 0.0
      %548 = vmatmul.mubr.f32.gmra.mrb[0].mxu0 %v481
      %v549 = vpop.f32.mrb[0].mxu0
      %v550 = vadd.f32 %v477, %v549
      %v551 = vpop.f32.mrb[0].mxu0
      %552 = vdwg.mxu0
      %v553 = vmul.f32 %v550, %v550
      %v554 = vsel %vm162, %v553, 0.0
      %555 = vadd.xlane.f32.xlu0 %v554
      %v556 = vpop.xlane.xlu0 %555
      %v557 = vadd.f32 %v556, 1e-12
      %v558 = vrsqrt.pop %v557
      %v559 = vmul.f32 %v550, %v558
      %560 = vst [vmem:[#allocation8] sm:$0x3] %v559
    $region41: #{tpu_custom_call.1} parent=1 // pred_fallthru
      _
    // Predicated region
    $region42: #{tpu_custom_call.1} parent=1 // pred_check
      _
    $region43: #{tpu_custom_call.1} parent=1 // pred_check_branch
      %562 = sbr.rel (0) target = $region45
    $region44: #{tpu_custom_call.1} parent=1 // pred_region
      %s564 = ssub.s32 32, 32
      %565 = vsyncadd [#allocation5], %s564
      %s567 = sshll.u32 [#allocation8], 4
      %s568 = int_to_ptr.vmem [resolvable:$true] %s567
      %570 = dma.vmem_to_hbm [thread:$0]  %s568, 32, %s6, [#allocation5]
    $region45: #{tpu_custom_call.1} parent=1 // pred_fallthru
      _
    // Predicated region
    $region46: #{tpu_custom_call.1} parent=1 // pred_check
      _
    $region47: #{tpu_custom_call.1} parent=1 // pred_check_branch
      %572 = sbr.rel (0) target = $region49
    $region48: #{tpu_custom_call.1} parent=1 // pred_region
      %573 = dma.done [#allocation5], 32
    $region49: #{tpu_custom_call.1} parent=1 // pred_fallthru
      _
    %574 = vsyncpa [#allocation4], 1
    %575 = vsyncpa [#allocation7], 1
    %576 = vsyncpa [#allocation5], 1

</llo_original>
